<compile_context>
chip_gen: v7x
topology: tpu7x:2x2x1
jax: 0.10.0
libtpu: 0.0.40
codegen_flags: <defaults>
</compile_context>

<pallas_src>
import functools

import jax
import jax.numpy as jnp
from jax.experimental import pallas as pl
from jax.experimental.pallas import tpu as pltpu


def _conv_normal_kernel(x_ref, w1_ref, b1_ref, w3_ref, b2_ref, mask_ref,
                        o_ref, *, H, W, B):
    """B images per grid step.  Layout: channels on sublanes, pixels on lanes.

    x_ref   : (B, Cin, H*W)       input images, NCHW with (H, W) flattened
    w1_ref  : (Cip, Cin)          1x1 conv weights, BN1 scale folded in,
                                  inner channels zero-padded to Cip (=8)
    b1_ref  : (Cip, 1)            folded BN1 bias (zero on padded rows)
    w3_ref  : (Cout, 9*Cip)       3x3 conv weights, BN2 scale folded in,
                                  K ordered as (ky, kx, cin_padded)
    b2_ref  : (Cout, 1)           folded BN2 bias
    mask_ref: (9, H*W)            precomputed pad=1 border masks (1.0 / 0.0)
    o_ref   : (B, Cin+Cout, H*W)  concat([x, y]) along channels
    """
    HW = H * W
    mask = mask_ref[...]                                       # (9, HW)

    for b in range(B):                                         # static unroll
        x = x_ref[b]                                           # (Cin, HW) f32

        # ---- 1x1 conv (MXU, scale pre-folded) + bias + ReLU ----------------
        inner = jnp.dot(w1_ref[...], x, preferred_element_type=jnp.float32)
        inner = jnp.maximum(inner + b1_ref[...], 0.0)          # (Cip, HW)

        # ---- im2col for the 3x3 conv: 9 lane-rolled taps * hoisted masks ---
        # Pixel p = h*W + w lives on the lane axis; tap (dy, dx) needs
        # inner_flat[p + dy*W + dx] (zero outside the image -> mask row).
        taps = []
        k = 0
        for dy in (-1, 0, 1):
            for dx in (-1, 0, 1):
                sh = dy * W + dx              # tap[p] = inner_flat[p + sh]
                if sh == 0:
                    t = inner                 # center tap: mask is all ones
                else:
                    t = pltpu.roll(inner, (-sh) % HW, axis=1) * mask[k:k + 1, :]
                taps.append(t)
                k += 1
        tap_mat = jnp.concatenate(taps, axis=0)                # (9*Cip, HW)

        # ---- 3x3 conv as ONE MXU matmul (K = 9*Cip) + bias + ReLU ----------
        acc = jnp.dot(w3_ref[...], tap_mat, preferred_element_type=jnp.float32)
        y = jnp.maximum(acc + b2_ref[...], 0.0)                # (Cout, HW)

        # ---- fused channel concat, single store per image -------------------
        o_ref[b] = jnp.concatenate([x, y], axis=0).astype(o_ref.dtype)


def _images_per_step(N):
    """One grid step on 1-TC chips (v5e/v6e); two steps on 2-TC v7x so both
    TensorCores get work via the 'parallel' grid axis."""
    try:
        kind = jax.devices()[0].device_kind.lower()
        two_tc = ("v7" in kind) or ("tpu7" in kind)
    except Exception:  # pragma: no cover - conservative fallback
        two_tc = False
    if two_tc and N >= 2:
        return (N + 1) // 2
    return min(N, 8)      # cap unroll; at 4x16x16 this is tiny VMEM either way


def conv_normal_forward(x_nchw, kparams):
    """ConvNormal.forward: concat([x, conv_branch(x)], dim=1).  NCHW in/out."""
    w1, b1, w3r, b2, mask = kparams
    N, Cin, H, W = x_nchw.shape
    Cip = w1.shape[0]
    Cout = w3r.shape[0]
    HW = H * W

    B = _images_per_step(N)
    n_steps = -(-N // B)
    Npad = n_steps * B

    x_flat = x_nchw.reshape(N, Cin, HW)          # free row-major reshape
    if Npad != N:
        x_flat = jnp.pad(x_flat, ((0, Npad - N), (0, 0), (0, 0)))

    kernel = functools.partial(_conv_normal_kernel, H=H, W=W, B=B)
    out_flat = pl.pallas_call(
        kernel,
        out_shape=jax.ShapeDtypeStruct((Npad, Cin + Cout, HW), jnp.float32),
        grid_spec=pltpu.PrefetchScalarGridSpec(
            num_scalar_prefetch=0,
            grid=(n_steps,),
            in_specs=[
                pl.BlockSpec((B, Cin, HW), lambda n: (n, 0, 0)),
                pl.BlockSpec((Cip, Cin), lambda n: (0, 0)),
                pl.BlockSpec((Cip, 1), lambda n: (0, 0)),
                pl.BlockSpec((Cout, 9 * Cip), lambda n: (0, 0)),
                pl.BlockSpec((Cout, 1), lambda n: (0, 0)),
                pl.BlockSpec((9, HW), lambda n: (0, 0)),
            ],
            out_specs=pl.BlockSpec((B, Cin + Cout, HW), lambda n: (n, 0, 0)),
        ),
        # "parallel" lets v7x's two TensorCores split the (short) grid; it is
        # a no-op on 1-TC v5e/v6e where the grid is a single step anyway.
        # TODO(synk): at real RANet stage sizes, add a row-band grid axis with
        # a 1-row halo and set vmem_limit_bytes per chip generation (16 MiB
        # scoped default on v5e, 32 MiB on v6e/v7x, 64 MiB physical on v7x).
        compiler_params=pltpu.CompilerParams(
            dimension_semantics=("parallel",)),
    )(x_flat, w1, b1, w3r, b2, mask)

    return out_flat[:N].reshape(N, Cin + Cout, H, W)


# ---------------------------------------------------------------------------
# Parameter construction / folding and a pure-JAX (XLA conv) reference.
# ---------------------------------------------------------------------------
def _make_params(key, nIn, nOut, bnWidth):
    """Deterministic params matching ConvBN(nIn, nOut, 'normal', True, bnWidth),
    stored in PyTorch-like layouts (OI / OIHW + BN stats)."""
    nInner = min(nIn, bnWidth * nOut)
    k = jax.random.split(key, 8)
    w1 = jax.random.normal(k[0], (nInner, nIn), jnp.float32) * 0.2      # 1x1
    g1 = 1.0 + 0.1 * jax.random.normal(k[1], (nInner,), jnp.float32)
    be1 = 0.1 * jax.random.normal(k[2], (nInner,), jnp.float32)
    m1 = 0.1 * jax.random.normal(k[3], (nInner,), jnp.float32)
    v1 = jnp.abs(jax.random.normal(k[4], (nInner,), jnp.float32)) + 0.5
    w3 = jax.random.normal(k[5], (nOut, nInner, 3, 3), jnp.float32) * 0.1
    g2 = 1.0 + 0.1 * jax.random.normal(k[6], (nOut,), jnp.float32)
    be2 = 0.1 * jax.random.normal(k[7], (nOut,), jnp.float32)
    m2 = jnp.zeros((nOut,), jnp.float32)
    v2 = jnp.ones((nOut,), jnp.float32)
    return (w1, g1, be1, m1, v1, w3, g2, be2, m2, v2)


def _make_border_mask(H, W):
    """Constant (9, H*W) {0,1} f32 masks for the 9 taps of a pad=1 3x3 conv."""
    pos = jnp.arange(H * W, dtype=jnp.int32)
    hh = pos // W
    ww = pos % W
    rows = []
    for dy in (-1, 0, 1):
        for dx in (-1, 0, 1):
            valid = ((hh + dy >= 0) & (hh + dy < H) &
                     (ww + dx >= 0) & (ww + dx < W))
            rows.append(valid.astype(jnp.float32))
    return jnp.stack(rows, axis=0)


def _fold_and_pack(params, H, W, eps=1e-5):
    """Fold BN (inference) scales into the conv weights, zero-pad the inner
    channels to a full 8-row sublane block, and pre-layout for the kernel."""
    w1, g1, be1, m1, v1, w3, g2, be2, m2, v2 = params
    s1 = g1 / jnp.sqrt(v1 + eps)
    b1 = be1 - m1 * s1
    s2 = g2 / jnp.sqrt(v2 + eps)
    b2 = be2 - m2 * s2
    Cout, Cinner = w3.shape[0], w3.shape[1]
    Cip = max(8, ((Cinner + 7) // 8) * 8)      # padded inner channels (sublane-aligned)

    # 1x1 weights: fold s1 (row scaling), pad rows with zeros.
    w1f = w1 * s1[:, None]
    w1p = jnp.zeros((Cip, w1.shape[1]), jnp.float32).at[:Cinner].set(w1f)
    b1p = jnp.zeros((Cip, 1), jnp.float32).at[:Cinner, 0].set(b1)

    # 3x3 weights: fold s2, pad input channels with zeros, then pack
    # OIHW (o,c,ky,kx) -> (ky,kx,c,o) -> (9*Cip, Cout) -> (Cout, 9*Cip).
    # K index = (ky*3 + kx)*Cip + c, matching the kernel's tap ordering.
    w3f = w3 * s2[:, None, None, None]
    w3p = jnp.zeros((Cout, Cip, 3, 3), jnp.float32).at[:, :Cinner].set(w3f)
    w3r = jnp.transpose(w3p, (2, 3, 1, 0)).reshape(9 * Cip, Cout).T
    b2p = b2[:, None]

    mask = _make_border_mask(H, W)
    return (w1p, b1p, w3r, b2p, mask)


def _reference(x_nchw, params, eps=1e-5):
    """Pure-JAX reference (XLA convs, NCHW, un-folded BN) for correctness."""
    w1, g1, be1, m1, v1, w3, g2, be2, m2, v2 = params
    y = jax.lax.conv_general_dilated(
        x_nchw, w1[:, :, None, None], (1, 1), "VALID",
        dimension_numbers=("NCHW", "OIHW", "NCHW"))
    s1 = g1 / jnp.sqrt(v1 + eps)
    b1 = be1 - m1 * s1
    y = jnp.maximum(y * s1[None, :, None, None] + b1[None, :, None, None], 0.0)
    y = jax.lax.conv_general_dilated(
        y, w3, (1, 1), ((1, 1), (1, 1)),
        dimension_numbers=("NCHW", "OIHW", "NCHW"))
    s2 = g2 / jnp.sqrt(v2 + eps)
    b2 = be2 - m2 * s2
    y = jnp.maximum(y * s2[None, :, None, None] + b2[None, :, None, None], 0.0)
    return jnp.concatenate([x_nchw, y], axis=1)


if __name__ == "__main__":
    nIn, nOut, bnWidth = 4, 8, 2     # ConvNormal(nIn=4, nOut=8, bottleneck=True, bnWidth=2)
    N, H, W = 2, 16, 16

    key = jax.random.PRNGKey(0)
    kx, kp = jax.random.split(key)
    x = jax.random.normal(kx, (N, nIn, H, W), jnp.float32)   # NCHW like PyTorch
    torch_params = _make_params(kp, nIn, nOut, bnWidth)
    kernel_params = _fold_and_pack(torch_params, H, W)

    out = jax.block_until_ready(conv_normal_forward(x, kernel_params))
    ref = jax.block_until_ready(_reference(x, torch_params))

    assert out.shape == (N, nIn + nOut, H, W), out.shape
    assert jnp.allclose(out, ref, atol=1e-4, rtol=1e-4), float(jnp.max(jnp.abs(out - ref)))
    print("KERNEL_OK")
</pallas_src>

<mosaic_0001>
module attributes {stable_mosaic.version = 11 : i64} {
  func.func @_conv_normal_kernel(%arg0: i32, %arg1: memref<2x4x256xf32, #tpu.memory_space<vmem>>, %arg2: memref<8x4xf32, #tpu.memory_space<vmem>>, %arg3: memref<8x1xf32, #tpu.memory_space<vmem>>, %arg4: memref<8x72xf32, #tpu.memory_space<vmem>>, %arg5: memref<8x1xf32, #tpu.memory_space<vmem>>, %arg6: memref<9x256xf32, #tpu.memory_space<vmem>>, %arg7: memref<2x12x256xf32, #tpu.memory_space<vmem>>) attributes {dimension_semantics = [#tpu.dimension_semantics<parallel>], iteration_bounds = array<i64: 1>, scalar_prefetch = 0 : i64, scratch_operands = 0 : i64, tpu.core_type = #tpu.core_type<tc>, window_params = [{transform_indices = @transform_0, window_bounds = array<i64: 2, 4, 256>}, {pipeline_mode = #tpu.pipeline_mode<synchronous>, transform_indices = @transform_1, window_bounds = array<i64: 8, 4>}, {pipeline_mode = #tpu.pipeline_mode<synchronous>, transform_indices = @transform_2, window_bounds = array<i64: 8, 1>}, {pipeline_mode = #tpu.pipeline_mode<synchronous>, transform_indices = @transform_3, window_bounds = array<i64: 8, 72>}, {pipeline_mode = #tpu.pipeline_mode<synchronous>, transform_indices = @transform_4, window_bounds = array<i64: 8, 1>}, {pipeline_mode = #tpu.pipeline_mode<synchronous>, transform_indices = @transform_5, window_bounds = array<i64: 9, 256>}, {transform_indices = @transform_6, window_bounds = array<i64: 2, 12, 256>}]} {
    %c0 = arith.constant 0 : index
    %c0_0 = arith.constant 0 : index
    %0 = vector.load %arg6[%c0, %c0_0] : memref<9x256xf32, #tpu.memory_space<vmem>>, vector<9x256xf32>
    %c0_1 = arith.constant 0 : index
    %c0_2 = arith.constant 0 : index
    %c0_3 = arith.constant 0 : index
    %1 = vector.load %arg1[%c0_1, %c0_2, %c0_3] : memref<2x4x256xf32, #tpu.memory_space<vmem>>, vector<1x4x256xf32>
    %2 = vector.shape_cast %1 : vector<1x4x256xf32> to vector<4x256xf32>
    %c0_4 = arith.constant 0 : index
    %c0_5 = arith.constant 0 : index
    %3 = vector.load %arg2[%c0_4, %c0_5] : memref<8x4xf32, #tpu.memory_space<vmem>>, vector<8x4xf32>
    %cst = arith.constant dense<0.000000e+00> : vector<8x256xf32>
    %4 = tpu.matmul %3, %2, %cst {dimension_numbers = #tpu.dot_dimension_numbers<[1], [0], [0], [1], [0, 0, 1, 1], [], []>} : vector<8x4xf32>, vector<4x256xf32>, vector<8x256xf32> -> vector<8x256xf32>
    %c0_6 = arith.constant 0 : index
    %c0_7 = arith.constant 0 : index
    %5 = vector.load %arg3[%c0_6, %c0_7] : memref<8x1xf32, #tpu.memory_space<vmem>>, vector<8x1xf32>
    %6 = vector.broadcast %5 : vector<8x1xf32> to vector<8x256xf32>
    %7 = arith.addf %4, %6 : vector<8x256xf32>
    %cst_8 = arith.constant 0.000000e+00 : f32
    %8 = vector.broadcast %cst_8 : f32 to vector<8x256xf32>
    %9 = arith.maximumf %7, %8 : vector<8x256xf32>
    %c17_i32 = arith.constant 17 : i32
    %10 = tpu.dynamic_rotate %9 by %c17_i32 dim 1 : vector<8x256xf32>, i32 -> vector<8x256xf32>
    %11 = vector.extract_strided_slice %0 {offsets = [0, 0], sizes = [1, 256], strides = [1, 1]} : vector<9x256xf32> to vector<1x256xf32>
    %12 = vector.broadcast %11 : vector<1x256xf32> to vector<8x256xf32>
    %13 = arith.mulf %10, %12 : vector<8x256xf32>
    %c16_i32 = arith.constant 16 : i32
    %14 = tpu.dynamic_rotate %9 by %c16_i32 dim 1 : vector<8x256xf32>, i32 -> vector<8x256xf32>
    %15 = vector.extract_strided_slice %0 {offsets = [1, 0], sizes = [1, 256], strides = [1, 1]} : vector<9x256xf32> to vector<1x256xf32>
    %16 = vector.broadcast %15 : vector<1x256xf32> to vector<8x256xf32>
    %17 = arith.mulf %14, %16 : vector<8x256xf32>
    %c15_i32 = arith.constant 15 : i32
    %18 = tpu.dynamic_rotate %9 by %c15_i32 dim 1 : vector<8x256xf32>, i32 -> vector<8x256xf32>
    %19 = vector.extract_strided_slice %0 {offsets = [2, 0], sizes = [1, 256], strides = [1, 1]} : vector<9x256xf32> to vector<1x256xf32>
    %20 = vector.broadcast %19 : vector<1x256xf32> to vector<8x256xf32>
    %21 = arith.mulf %18, %20 : vector<8x256xf32>
    %c1_i32 = arith.constant 1 : i32
    %22 = tpu.dynamic_rotate %9 by %c1_i32 dim 1 : vector<8x256xf32>, i32 -> vector<8x256xf32>
    %23 = vector.extract_strided_slice %0 {offsets = [3, 0], sizes = [1, 256], strides = [1, 1]} : vector<9x256xf32> to vector<1x256xf32>
    %24 = vector.broadcast %23 : vector<1x256xf32> to vector<8x256xf32>
    %25 = arith.mulf %22, %24 : vector<8x256xf32>
    %c255_i32 = arith.constant 255 : i32
    %26 = tpu.dynamic_rotate %9 by %c255_i32 dim 1 : vector<8x256xf32>, i32 -> vector<8x256xf32>
    %27 = vector.extract_strided_slice %0 {offsets = [5, 0], sizes = [1, 256], strides = [1, 1]} : vector<9x256xf32> to vector<1x256xf32>
    %28 = vector.broadcast %27 : vector<1x256xf32> to vector<8x256xf32>
    %29 = arith.mulf %26, %28 : vector<8x256xf32>
    %c241_i32 = arith.constant 241 : i32
    %30 = tpu.dynamic_rotate %9 by %c241_i32 dim 1 : vector<8x256xf32>, i32 -> vector<8x256xf32>
    %31 = vector.extract_strided_slice %0 {offsets = [6, 0], sizes = [1, 256], strides = [1, 1]} : vector<9x256xf32> to vector<1x256xf32>
    %32 = vector.broadcast %31 : vector<1x256xf32> to vector<8x256xf32>
    %33 = arith.mulf %30, %32 : vector<8x256xf32>
    %c240_i32 = arith.constant 240 : i32
    %34 = tpu.dynamic_rotate %9 by %c240_i32 dim 1 : vector<8x256xf32>, i32 -> vector<8x256xf32>
    %35 = vector.extract_strided_slice %0 {offsets = [7, 0], sizes = [1, 256], strides = [1, 1]} : vector<9x256xf32> to vector<1x256xf32>
    %36 = vector.broadcast %35 : vector<1x256xf32> to vector<8x256xf32>
    %37 = arith.mulf %34, %36 : vector<8x256xf32>
    %c239_i32 = arith.constant 239 : i32
    %38 = tpu.dynamic_rotate %9 by %c239_i32 dim 1 : vector<8x256xf32>, i32 -> vector<8x256xf32>
    %39 = vector.extract_strided_slice %0 {offsets = [8, 0], sizes = [1, 256], strides = [1, 1]} : vector<9x256xf32> to vector<1x256xf32>
    %40 = vector.broadcast %39 : vector<1x256xf32> to vector<8x256xf32>
    %41 = arith.mulf %38, %40 : vector<8x256xf32>
    %42 = tpu.concatenate %13, %17, %21, %25, %9, %29, %33, %37, %41 in 0 : vector<8x256xf32>, vector<8x256xf32>, vector<8x256xf32>, vector<8x256xf32>, vector<8x256xf32>, vector<8x256xf32>, vector<8x256xf32>, vector<8x256xf32>, vector<8x256xf32> -> vector<72x256xf32>
    %c0_9 = arith.constant 0 : index
    %c0_10 = arith.constant 0 : index
    %43 = vector.load %arg4[%c0_9, %c0_10] : memref<8x72xf32, #tpu.memory_space<vmem>>, vector<8x72xf32>
    %cst_11 = arith.constant dense<0.000000e+00> : vector<8x256xf32>
    %44 = tpu.matmul %43, %42, %cst_11 {dimension_numbers = #tpu.dot_dimension_numbers<[1], [0], [0], [1], [0, 0, 1, 1], [], []>} : vector<8x72xf32>, vector<72x256xf32>, vector<8x256xf32> -> vector<8x256xf32>
    %c0_12 = arith.constant 0 : index
    %c0_13 = arith.constant 0 : index
    %45 = vector.load %arg5[%c0_12, %c0_13] : memref<8x1xf32, #tpu.memory_space<vmem>>, vector<8x1xf32>
    %46 = vector.broadcast %45 : vector<8x1xf32> to vector<8x256xf32>
    %47 = arith.addf %44, %46 : vector<8x256xf32>
    %cst_14 = arith.constant 0.000000e+00 : f32
    %48 = vector.broadcast %cst_14 : f32 to vector<8x256xf32>
    %49 = arith.maximumf %47, %48 : vector<8x256xf32>
    %50 = tpu.concatenate %2, %49 in 0 : vector<4x256xf32>, vector<8x256xf32> -> vector<12x256xf32>
    %c0_15 = arith.constant 0 : index
    %c0_16 = arith.constant 0 : index
    %c0_17 = arith.constant 0 : index
    %51 = vector.load %arg7[%c0_15, %c0_16, %c0_17] : memref<2x12x256xf32, #tpu.memory_space<vmem>>, vector<1x12x256xf32>
    %52 = vector.shape_cast %51 : vector<1x12x256xf32> to vector<12x256xf32>
    %53 = vector.shape_cast %50 : vector<12x256xf32> to vector<1x12x256xf32>
    tpu.vector_store %arg7[%c0_15, %c0_16, %c0_17], %53 {strides = array<i32>} : memref<2x12x256xf32, #tpu.memory_space<vmem>>, vector<1x12x256xf32>,
    %c1 = arith.constant 1 : index
    %c0_18 = arith.constant 0 : index
    %c0_19 = arith.constant 0 : index
    %54 = vector.load %arg1[%c1, %c0_18, %c0_19] : memref<2x4x256xf32, #tpu.memory_space<vmem>>, vector<1x4x256xf32>
    %55 = vector.shape_cast %54 : vector<1x4x256xf32> to vector<4x256xf32>
    %c0_20 = arith.constant 0 : index
    %c0_21 = arith.constant 0 : index
    %56 = vector.load %arg2[%c0_20, %c0_21] : memref<8x4xf32, #tpu.memory_space<vmem>>, vector<8x4xf32>
    %cst_22 = arith.constant dense<0.000000e+00> : vector<8x256xf32>
    %57 = tpu.matmul %56, %55, %cst_22 {dimension_numbers = #tpu.dot_dimension_numbers<[1], [0], [0], [1], [0, 0, 1, 1], [], []>} : vector<8x4xf32>, vector<4x256xf32>, vector<8x256xf32> -> vector<8x256xf32>
    %c0_23 = arith.constant 0 : index
    %c0_24 = arith.constant 0 : index
    %58 = vector.load %arg3[%c0_23, %c0_24] : memref<8x1xf32, #tpu.memory_space<vmem>>, vector<8x1xf32>
    %59 = vector.broadcast %58 : vector<8x1xf32> to vector<8x256xf32>
    %60 = arith.addf %57, %59 : vector<8x256xf32>
    %cst_25 = arith.constant 0.000000e+00 : f32
    %61 = vector.broadcast %cst_25 : f32 to vector<8x256xf32>
    %62 = arith.maximumf %60, %61 : vector<8x256xf32>
    %c17_i32_26 = arith.constant 17 : i32
    %63 = tpu.dynamic_rotate %62 by %c17_i32_26 dim 1 : vector<8x256xf32>, i32 -> vector<8x256xf32>
    %64 = vector.extract_strided_slice %0 {offsets = [0, 0], sizes = [1, 256], strides = [1, 1]} : vector<9x256xf32> to vector<1x256xf32>
    %65 = vector.broadcast %64 : vector<1x256xf32> to vector<8x256xf32>
    %66 = arith.mulf %63, %65 : vector<8x256xf32>
    %c16_i32_27 = arith.constant 16 : i32
    %67 = tpu.dynamic_rotate %62 by %c16_i32_27 dim 1 : vector<8x256xf32>, i32 -> vector<8x256xf32>
    %68 = vector.extract_strided_slice %0 {offsets = [1, 0], sizes = [1, 256], strides = [1, 1]} : vector<9x256xf32> to vector<1x256xf32>
    %69 = vector.broadcast %68 : vector<1x256xf32> to vector<8x256xf32>
    %70 = arith.mulf %67, %69 : vector<8x256xf32>
    %c15_i32_28 = arith.constant 15 : i32
    %71 = tpu.dynamic_rotate %62 by %c15_i32_28 dim 1 : vector<8x256xf32>, i32 -> vector<8x256xf32>
    %72 = vector.extract_strided_slice %0 {offsets = [2, 0], sizes = [1, 256], strides = [1, 1]} : vector<9x256xf32> to vector<1x256xf32>
    %73 = vector.broadcast %72 : vector<1x256xf32> to vector<8x256xf32>
    %74 = arith.mulf %71, %73 : vector<8x256xf32>
    %c1_i32_29 = arith.constant 1 : i32
    %75 = tpu.dynamic_rotate %62 by %c1_i32_29 dim 1 : vector<8x256xf32>, i32 -> vector<8x256xf32>
    %76 = vector.extract_strided_slice %0 {offsets = [3, 0], sizes = [1, 256], strides = [1, 1]} : vector<9x256xf32> to vector<1x256xf32>
    %77 = vector.broadcast %76 : vector<1x256xf32> to vector<8x256xf32>
    %78 = arith.mulf %75, %77 : vector<8x256xf32>
    %c255_i32_30 = arith.constant 255 : i32
    %79 = tpu.dynamic_rotate %62 by %c255_i32_30 dim 1 : vector<8x256xf32>, i32 -> vector<8x256xf32>
    %80 = vector.extract_strided_slice %0 {offsets = [5, 0], sizes = [1, 256], strides = [1, 1]} : vector<9x256xf32> to vector<1x256xf32>
    %81 = vector.broadcast %80 : vector<1x256xf32> to vector<8x256xf32>
    %82 = arith.mulf %79, %81 : vector<8x256xf32>
    %c241_i32_31 = arith.constant 241 : i32
    %83 = tpu.dynamic_rotate %62 by %c241_i32_31 dim 1 : vector<8x256xf32>, i32 -> vector<8x256xf32>
    %84 = vector.extract_strided_slice %0 {offsets = [6, 0], sizes = [1, 256], strides = [1, 1]} : vector<9x256xf32> to vector<1x256xf32>
    %85 = vector.broadcast %84 : vector<1x256xf32> to vector<8x256xf32>
    %86 = arith.mulf %83, %85 : vector<8x256xf32>
    %c240_i32_32 = arith.constant 240 : i32
    %87 = tpu.dynamic_rotate %62 by %c240_i32_32 dim 1 : vector<8x256xf32>, i32 -> vector<8x256xf32>
    %88 = vector.extract_strided_slice %0 {offsets = [7, 0], sizes = [1, 256], strides = [1, 1]} : vector<9x256xf32> to vector<1x256xf32>
    %89 = vector.broadcast %88 : vector<1x256xf32> to vector<8x256xf32>
    %90 = arith.mulf %87, %89 : vector<8x256xf32>
    %c239_i32_33 = arith.constant 239 : i32
    %91 = tpu.dynamic_rotate %62 by %c239_i32_33 dim 1 : vector<8x256xf32>, i32 -> vector<8x256xf32>
    %92 = vector.extract_strided_slice %0 {offsets = [8, 0], sizes = [1, 256], strides = [1, 1]} : vector<9x256xf32> to vector<1x256xf32>
    %93 = vector.broadcast %92 : vector<1x256xf32> to vector<8x256xf32>
    %94 = arith.mulf %91, %93 : vector<8x256xf32>
    %95 = tpu.concatenate %66, %70, %74, %78, %62, %82, %86, %90, %94 in 0 : vector<8x256xf32>, vector<8x256xf32>, vector<8x256xf32>, vector<8x256xf32>, vector<8x256xf32>, vector<8x256xf32>, vector<8x256xf32>, vector<8x256xf32>, vector<8x256xf32> -> vector<72x256xf32>
    %c0_34 = arith.constant 0 : index
    %c0_35 = arith.constant 0 : index
    %96 = vector.load %arg4[%c0_34, %c0_35] : memref<8x72xf32, #tpu.memory_space<vmem>>, vector<8x72xf32>
    %cst_36 = arith.constant dense<0.000000e+00> : vector<8x256xf32>
    %97 = tpu.matmul %96, %95, %cst_36 {dimension_numbers = #tpu.dot_dimension_numbers<[1], [0], [0], [1], [0, 0, 1, 1], [], []>} : vector<8x72xf32>, vector<72x256xf32>, vector<8x256xf32> -> vector<8x256xf32>
    %c0_37 = arith.constant 0 : index
    %c0_38 = arith.constant 0 : index
    %98 = vector.load %arg5[%c0_37, %c0_38] : memref<8x1xf32, #tpu.memory_space<vmem>>, vector<8x1xf32>
    %99 = vector.broadcast %98 : vector<8x1xf32> to vector<8x256xf32>
    %100 = arith.addf %97, %99 : vector<8x256xf32>
    %cst_39 = arith.constant 0.000000e+00 : f32
    %101 = vector.broadcast %cst_39 : f32 to vector<8x256xf32>
    %102 = arith.maximumf %100, %101 : vector<8x256xf32>
    %103 = tpu.concatenate %55, %102 in 0 : vector<4x256xf32>, vector<8x256xf32> -> vector<12x256xf32>
    %c1_40 = arith.constant 1 : index
    %c0_41 = arith.constant 0 : index
    %c0_42 = arith.constant 0 : index
    %104 = vector.load %arg7[%c1_40, %c0_41, %c0_42] : memref<2x12x256xf32, #tpu.memory_space<vmem>>, vector<1x12x256xf32>
    %105 = vector.shape_cast %104 : vector<1x12x256xf32> to vector<12x256xf32>
    %106 = vector.shape_cast %103 : vector<12x256xf32> to vector<1x12x256xf32>
    tpu.vector_store %arg7[%c1_40, %c0_41, %c0_42], %106 {strides = array<i32>} : memref<2x12x256xf32, #tpu.memory_space<vmem>>, vector<1x12x256xf32>,
    return
  }
  func.func @transform_0(%arg0: i32) -> (i32, i32, i32) {
    %c0_i32 = arith.constant 0 : i32
    %c0_i32_0 = arith.constant 0 : i32
    %c0_i32_1 = arith.constant 0 : i32
    return %arg0, %c0_i32, %c0_i32_0 : i32, i32, i32
  }
  func.func @transform_1(%arg0: i32) -> (i32, i32) {
    %c0_i32 = arith.constant 0 : i32
    %c0_i32_0 = arith.constant 0 : i32
    %c0_i32_1 = arith.constant 0 : i32
    return %c0_i32, %c0_i32_0 : i32, i32
  }
  func.func @transform_2(%arg0: i32) -> (i32, i32) {
    %c0_i32 = arith.constant 0 : i32
    %c0_i32_0 = arith.constant 0 : i32
    %c0_i32_1 = arith.constant 0 : i32
    return %c0_i32, %c0_i32_0 : i32, i32
  }
  func.func @transform_3(%arg0: i32) -> (i32, i32) {
    %c0_i32 = arith.constant 0 : i32
    %c0_i32_0 = arith.constant 0 : i32
    %c0_i32_1 = arith.constant 0 : i32
    return %c0_i32, %c0_i32_0 : i32, i32
  }
  func.func @transform_4(%arg0: i32) -> (i32, i32) {
    %c0_i32 = arith.constant 0 : i32
    %c0_i32_0 = arith.constant 0 : i32
    %c0_i32_1 = arith.constant 0 : i32
    return %c0_i32, %c0_i32_0 : i32, i32
  }
  func.func @transform_5(%arg0: i32) -> (i32, i32) {
    %c0_i32 = arith.constant 0 : i32
    %c0_i32_0 = arith.constant 0 : i32
    %c0_i32_1 = arith.constant 0 : i32
    return %c0_i32, %c0_i32_0 : i32, i32
  }
  func.func @transform_6(%arg0: i32) -> (i32, i32, i32) {
    %c0_i32 = arith.constant 0 : i32
    %c0_i32_0 = arith.constant 0 : i32
    %c0_i32_1 = arith.constant 0 : i32
    return %arg0, %c0_i32, %c0_i32_0 : i32, i32, i32
  }
}

</mosaic_0001>

<llo_original>
// kernel: tpu_custom_call.1
$region0: #{tpu_custom_call.1}
  #allocation0 [shape = 'u32[]', space=smem, size = 0x4, offset = 0x4, fixed_abs, tag = 'smem constant byte address 0x4 - core index']
  #allocation1 [shape = 'u32[144,128]{1,0:T(1,128)}', space=vmem, size = 0x12000, scoped, tag = 'internal scratch']
  %s0 = inlined_call_operand.vmem [shape: f32[2,4,256], index: 0, kind: input, shape index: {}]
  %s1 = inlined_call_operand.vmem [shape: f32[8,4], index: 1, kind: input, shape index: {}]
  %s2 = inlined_call_operand.vmem [shape: f32[8,1], index: 2, kind: input, shape index: {}]
  %s3 = inlined_call_operand.hbm [shape: f32[8,72], index: 3, kind: input, shape index: {}]
  %s4 = inlined_call_operand.vmem [shape: f32[8,1], index: 4, kind: input, shape index: {}]
  %s5 = inlined_call_operand.vmem [shape: f32[9,256], index: 5, kind: input, shape index: {}]
  %s6 = inlined_call_operand.vmem [shape: f32[2,12,256], index: 6, kind: output, shape index: {}]
  %s7 = sld [smem:[#allocation0]]
  $region38: #{tpu_custom_call.1} parent=0
    _
  %s9 = ssub.s32 1, %s7
  %s10 = scalar_select 0, %s9, %s7
  $region1: #{tpu_custom_call.1} parent=0
    #allocation2 [shape = 'u8[4096]{0}', space=vmem, size = 0x1000, scoped, tag = 'input window, operand 3, single buffered']
    #allocation3 [shape = 's32[1]{0}', space=sflag, size = 0x4, scoped, tag = 'scoped memory for tpu_custom_call.1']
    %11 = vsyncpa [#allocation3], 0
    // Predicated region
    $region2: #{tpu_custom_call.1} parent=1 // pred_check
      _
    $region3: #{tpu_custom_call.1} parent=1 // pred_check_branch
      %13 = sbr.rel (0) target = $region5
    $region4: #{tpu_custom_call.1} parent=1 // pred_region
      _
    $region5: #{tpu_custom_call.1} parent=1 // pred_fallthru
      _
    // Predicated region
    $region6: #{tpu_custom_call.1} parent=1 // pred_check
      _
    $region7: #{tpu_custom_call.1} parent=1 // pred_check_branch
      %15 = sbr.rel (0) target = $region9
    $region8: #{tpu_custom_call.1} parent=1 // pred_region
      _
    $region9: #{tpu_custom_call.1} parent=1 // pred_fallthru
      _
    // Predicated region
    $region10: #{tpu_custom_call.1} parent=1 // pred_check
      _
    $region11: #{tpu_custom_call.1} parent=1 // pred_check_branch
      %17 = sbr.rel (0) target = $region13
    $region12: #{tpu_custom_call.1} parent=1 // pred_region
      _
    $region13: #{tpu_custom_call.1} parent=1 // pred_fallthru
      _
    // Predicated region
    $region14: #{tpu_custom_call.1} parent=1 // pred_check
      _
    $region15: #{tpu_custom_call.1} parent=1 // pred_check_branch
      %19 = sbr.rel (0) target = $region17
    $region16: #{tpu_custom_call.1} parent=1 // pred_region
      %s21 = ssub.s32 128, 128
      %22 = vsyncadd [#allocation3], %s21
      %s24 = sshll.u32 [#allocation2], 4
      %s25 = int_to_ptr.vmem [resolvable:$true] %s24
      %27 = dma.hbm_to_vmem [thread:$0]  %s3, 128, %s25, [#allocation3]
    $region17: #{tpu_custom_call.1} parent=1 // pred_fallthru
      _
    // Predicated region
    $region18: #{tpu_custom_call.1} parent=1 // pred_check
      _
    $region19: #{tpu_custom_call.1} parent=1 // pred_check_branch
      %29 = sbr.rel (0) target = $region21
    $region20: #{tpu_custom_call.1} parent=1 // pred_region
      _
    $region21: #{tpu_custom_call.1} parent=1 // pred_fallthru
      _
    // Predicated region
    $region22: #{tpu_custom_call.1} parent=1 // pred_check
      _
    $region23: #{tpu_custom_call.1} parent=1 // pred_check_branch
      %31 = sbr.rel (0) target = $region25
    $region24: #{tpu_custom_call.1} parent=1 // pred_region
      _
    $region25: #{tpu_custom_call.1} parent=1 // pred_fallthru
      _
    // Predicated region
    $region26: #{tpu_custom_call.1} parent=1 // pred_check
      _
    $region27: #{tpu_custom_call.1} parent=1 // pred_check_branch
      %33 = sbr.rel (0) target = $region29
    $region28: #{tpu_custom_call.1} parent=1 // pred_region
      %34 = dma.done [#allocation3], 128
    $region29: #{tpu_custom_call.1} parent=1 // pred_fallthru
      _
    %v35 = vld [vmem:[%s5] sm:$0xff]
    %v36 = vld [vmem:[%s5 + $0x8] sm:$0xff]
    %v37 = vld [vmem:[%s5 + $0x10] sm:$0x1]
    %v38 = vld [vmem:[%s5 + $0x18] sm:$0x1]
    %v39 = vld [vmem:[%s0] sm:$0xff]
    %v40 = vld [vmem:[%s1] sm:$0xff]
    %v41 = vld [vmem:[%s2] sm:$0xff]
    %43 = vset.pattern.permute.xlu0 0
    %44 = vperm.xlu0 %43, %v41
    %v45 = vpop.permute.xlu0 %44
    %v48 = vcombine.high %v39, %v39
    %vm49 = vcmask 31744
    %v51 = vsel %vm49, %v40, 0
    %vm53 = vcmask 1043456
    %v54 = vsel %vm53, %v39, 0
    %v56 = vsel %vm53, %v48, 0
    %58 = vmatprep.subr.mxu0 %v56
    %59 = vmatpush1.msra.mxu0 %v54
    %60 = vmatprep.subr.mxu0 0.0
    %61 = vmatpush1.msra.mxu0 0.0
    %62 = vmatprep.subr.mxu0 0.0
    %63 = vmatpush1.msra.mxu0 0.0
    %64 = vmatprep.subr.mxu0 0.0
    %65 = vmatpush1.msra.mxu0 0.0
    %66 = vmatprep.subr.mxu0 0.0
    %67 = vmatpush1.msra.mxu0 0.0
    %68 = vmatprep.subr.mxu0 0.0
    %69 = vmatpush1.msra.mxu0 0.0
    %70 = vmatprep.subr.mxu0 0.0
    %71 = vmatpush1.msra.mxu0 0.0
    %72 = vmatprep.subr.mxu0 0.0
    %73 = vmatpush1.msra.mxu0 0.0
    %74 = vmatprep.subr.mxu0 0.0
    %75 = vmatpush1.msra.mxu0 0.0
    %76 = vmatprep.subr.mxu0 0.0
    %77 = vmatpush1.msra.mxu0 0.0
    %78 = vmatprep.subr.mxu0 0.0
    %79 = vmatpush1.msra.mxu0 0.0
    %80 = vmatprep.subr.mxu0 0.0
    %81 = vmatpush1.msra.mxu0 0.0
    %82 = vmatprep.subr.mxu0 0.0
    %83 = vmatpush1.msra.mxu0 0.0
    %84 = vmatprep.subr.mxu0 0.0
    %85 = vmatpush1.msra.mxu0 0.0
    %86 = vmatprep.subr.mxu0 0.0
    %87 = vmatpush1.msra.mxu0 0.0
    %88 = vmatprep.subr.mxu0 0.0
    %89 = vmatpush1.msra.mxu0 0.0
    %90 = vmatprep.subr.mxu0 0.0
    %91 = vmatpush1.msra.mxu0 0.0
    %92 = vmatprep.subr.mxu0 0.0
    %93 = vmatpush1.msra.mxu0 0.0
    %94 = vmatprep.subr.mxu0 0.0
    %95 = vmatpush1.msra.mxu0 0.0
    %96 = vmatprep.subr.mxu0 0.0
    %97 = vmatpush1.msra.mxu0 0.0
    %98 = vmatprep.subr.mxu0 0.0
    %99 = vmatpush1.msra.mxu0 0.0
    %100 = vmatprep.subr.mxu0 0.0
    %101 = vmatpush1.msra.mxu0 0.0
    %102 = vmatprep.subr.mxu0 0.0
    %103 = vmatpush1.msra.mxu0 0.0
    %104 = vmatprep.subr.mxu0 0.0
    %105 = vmatpush1.msra.mxu0 0.0
    %106 = vmatprep.subr.mxu0 0.0
    %107 = vmatpush1.msra.mxu0 0.0
    %108 = vmatprep.subr.mxu0 0.0
    %109 = vmatpush1.msra.mxu0 0.0
    %110 = vmatprep.subr.mxu0 0.0
    %111 = vmatpush1.msra.mxu0 0.0
    %112 = vmatprep.subr.mxu0 0.0
    %113 = vmatpush1.msra.mxu0 0.0
    %114 = vmatprep.subr.mxu0 0.0
    %115 = vmatpush1.msra.mxu0 0.0
    %116 = vmatprep.subr.mxu0 0.0
    %117 = vmatpush1.msra.mxu0 0.0
    %118 = vmatprep.subr.mxu0 0.0
    %119 = vmatpush1.msra.mxu0 0.0
    %120 = vmatprep.subr.mxu0 0.0
    %121 = vmatpush1.msra.mxu0 0.0
    %122 = vmatprep.mubr.f32.mxu0 0.0
    %123 = vmatmul.mubr.f32.gmra.mrb[0].mxu0 %v51
    %v124 = vpop.f32.mrb[0].mxu0
    %v125 = vadd.f32 %v45, %v124
    %v126 = vpop.f32.mrb[0].mxu0
    %v127 = vadd.f32 %v45, %v126
    %128 = vdwg.mxu0
    %v129 = vmax.f32 %v125, 0.0
    %v130 = vmax.f32 %v127, 0.0
    %131 = vrot.lane.b32.xlu0 %v129, 17
    %v132 = vpop.permute.xlu0 %131
    %133 = vrot.lane.b32.xlu0 %v130, 17
    %v134 = vpop.permute.xlu0 %133
    %v135 = vlaneseq
    %v136 = vand.u32 %v135, 127
    %vm137 = vcmp.lt.s32.totalorder %v136, 17
    %v138 = vsel %vm137, %v132, %v134
    %v139 = vsel %vm137, %v134, %v132
    %v140 = vlaneseq
    %v141 = vshrl.u32 %v140, 7
    %v142 = vsub.s32 0, %v141
    %v143 = vrot.slane %v35, %v142
    %v144 = vlaneseq
    %v145 = vshrl.u32 %v144, 7
    %v146 = vsub.s32 0, %v145
    %v147 = vrot.slane %v36, %v146
    %v148 = vmul.f32 %v139, %v143
    %v149 = vmul.f32 %v138, %v147
    %150 = vrot.lane.b32.xlu0 %v129, 16
    %v151 = vpop.permute.xlu0 %150
    %152 = vrot.lane.b32.xlu0 %v130, 16
    %v153 = vpop.permute.xlu0 %152
    %vm154 = vcmp.lt.s32.totalorder %v136, 16
    %v155 = vsel %vm154, %v151, %v153
    %v156 = vsel %vm154, %v153, %v151
    %v157 = vlaneseq
    %v158 = vshrl.u32 %v157, 7
    %v159 = vsub.s32 1, %v158
    %v160 = vrot.slane %v35, %v159
    %v161 = vlaneseq
    %v162 = vshrl.u32 %v161, 7
    %v163 = vsub.s32 1, %v162
    %v164 = vrot.slane %v36, %v163
    %v165 = vmul.f32 %v156, %v160
    %v166 = vmul.f32 %v155, %v164
    %167 = vrot.lane.b32.xlu0 %v129, 15
    %v168 = vpop.permute.xlu0 %167
    %169 = vrot.lane.b32.xlu0 %v130, 15
    %v170 = vpop.permute.xlu0 %169
    %vm171 = vcmp.lt.s32.totalorder %v136, 15
    %v172 = vsel %vm171, %v168, %v170
    %v173 = vsel %vm171, %v170, %v168
    %v174 = vlaneseq
    %v175 = vshrl.u32 %v174, 7
    %v176 = vsub.s32 2, %v175
    %v177 = vrot.slane %v35, %v176
    %v178 = vlaneseq
    %v179 = vshrl.u32 %v178, 7
    %v180 = vsub.s32 2, %v179
    %v181 = vrot.slane %v36, %v180
    %v182 = vmul.f32 %v173, %v177
    %v183 = vmul.f32 %v172, %v181
    %184 = vrot.lane.b32.xlu0 %v129, 1
    %v185 = vpop.permute.xlu0 %184
    %186 = vrot.lane.b32.xlu0 %v130, 1
    %v187 = vpop.permute.xlu0 %186
    %vm188 = vcmp.lt.s32.totalorder %v136, 1
    %v189 = vsel %vm188, %v185, %v187
    %v190 = vsel %vm188, %v187, %v185
    %v191 = vlaneseq
    %v192 = vshrl.u32 %v191, 7
    %v193 = vsub.s32 3, %v192
    %v194 = vrot.slane %v35, %v193
    %v195 = vlaneseq
    %v196 = vshrl.u32 %v195, 7
    %v197 = vsub.s32 3, %v196
    %v198 = vrot.slane %v36, %v197
    %v199 = vmul.f32 %v190, %v194
    %v200 = vmul.f32 %v189, %v198
    %201 = vrot.lane.b32.xlu0 %v129, 127
    %v202 = vpop.permute.xlu0 %201
    %203 = vrot.lane.b32.xlu0 %v130, 127
    %v204 = vpop.permute.xlu0 %203
    %vm205 = vcmp.lt.s32.totalorder %v136, 127
    %v206 = vsel %vm205, %v202, %v204
    %v207 = vsel %vm205, %v204, %v202
    %v208 = vlaneseq
    %v209 = vshrl.u32 %v208, 7
    %v210 = vsub.s32 5, %v209
    %v211 = vrot.slane %v35, %v210
    %v212 = vlaneseq
    %v213 = vshrl.u32 %v212, 7
    %v214 = vsub.s32 5, %v213
    %v215 = vrot.slane %v36, %v214
    %v216 = vmul.f32 %v206, %v211
    %v217 = vmul.f32 %v207, %v215
    %218 = vrot.lane.b32.xlu0 %v129, 113
    %v219 = vpop.permute.xlu0 %218
    %220 = vrot.lane.b32.xlu0 %v130, 113
    %v221 = vpop.permute.xlu0 %220
    %vm222 = vcmp.lt.s32.totalorder %v136, 113
    %v223 = vsel %vm222, %v219, %v221
    %v224 = vsel %vm222, %v221, %v219
    %v225 = vlaneseq
    %v226 = vshrl.u32 %v225, 7
    %v227 = vsub.s32 6, %v226
    %v228 = vrot.slane %v35, %v227
    %v229 = vlaneseq
    %v230 = vshrl.u32 %v229, 7
    %v231 = vsub.s32 6, %v230
    %v232 = vrot.slane %v36, %v231
    %v233 = vmul.f32 %v223, %v228
    %v234 = vmul.f32 %v224, %v232
    %235 = vrot.lane.b32.xlu0 %v129, 112
    %v236 = vpop.permute.xlu0 %235
    %237 = vrot.lane.b32.xlu0 %v130, 112
    %v238 = vpop.permute.xlu0 %237
    %vm239 = vcmp.lt.s32.totalorder %v136, 112
    %v240 = vsel %vm239, %v236, %v238
    %v241 = vsel %vm239, %v238, %v236
    %v242 = vlaneseq
    %v243 = vshrl.u32 %v242, 7
    %v244 = vsub.s32 7, %v243
    %v245 = vrot.slane %v35, %v244
    %v246 = vlaneseq
    %v247 = vshrl.u32 %v246, 7
    %v248 = vsub.s32 7, %v247
    %v249 = vrot.slane %v36, %v248
    %v250 = vmul.f32 %v240, %v245
    %v251 = vmul.f32 %v241, %v249
    %252 = vrot.lane.b32.xlu0 %v129, 111
    %v253 = vpop.permute.xlu0 %252
    %254 = vrot.lane.b32.xlu0 %v130, 111
    %v255 = vpop.permute.xlu0 %254
    %vm256 = vcmp.lt.s32.totalorder %v136, 111
    %v257 = vsel %vm256, %v253, %v255
    %v258 = vsel %vm256, %v255, %v253
    %v259 = vlaneseq
    %v260 = vshrl.u32 %v259, 7
    %v261 = vsub.s32 0, %v260
    %v262 = vrot.slane %v37, %v261
    %v263 = vlaneseq
    %v264 = vshrl.u32 %v263, 7
    %v265 = vsub.s32 0, %v264
    %v266 = vrot.slane %v38, %v265
    %v267 = vmul.f32 %v257, %v262
    %v268 = vmul.f32 %v258, %v266
    %v269 = vld [vmem:[#allocation2] sm:$0xff]
    %v270 = vld [vmem:[%s4] sm:$0xff]
    %272 = vset.pattern.permute.xlu0 0
    %273 = vperm.xlu0 %272, %v270
    %v274 = vpop.permute.xlu0 %273
    %vm276 = vcmask 588800
    %v278 = vsel %vm276, %v269, 0
    %280 = vmatprep.subr.mxu0 %v149
    %281 = vmatpush1.msra.mxu0 %v148
    %282 = vmatprep.subr.mxu0 %v166
    %283 = vmatpush1.msra.mxu0 %v165
    %284 = vmatprep.subr.mxu0 %v183
    %285 = vmatpush1.msra.mxu0 %v182
    %286 = vmatprep.subr.mxu0 %v200
    %287 = vmatpush1.msra.mxu0 %v199
    %288 = vmatprep.subr.mxu0 %v130
    %289 = vmatpush1.msra.mxu0 %v129
    %290 = vmatprep.subr.mxu0 %v217
    %291 = vmatpush1.msra.mxu0 %v216
    %292 = vmatprep.subr.mxu0 %v234
    %293 = vmatpush1.msra.mxu0 %v233
    %294 = vmatprep.subr.mxu0 %v251
    %295 = vmatpush1.msra.mxu0 %v250
    %296 = vmatprep.subr.mxu0 %v268
    %297 = vmatpush1.msra.mxu0 %v267
    %298 = vmatprep.subr.mxu0 0.0
    %299 = vmatpush1.msra.mxu0 0.0
    %300 = vmatprep.subr.mxu0 0.0
    %301 = vmatpush1.msra.mxu0 0.0
    %302 = vmatprep.subr.mxu0 0.0
    %303 = vmatpush1.msra.mxu0 0.0
    %304 = vmatprep.subr.mxu0 0.0
    %305 = vmatpush1.msra.mxu0 0.0
    %306 = vmatprep.subr.mxu0 0.0
    %307 = vmatpush1.msra.mxu0 0.0
    %308 = vmatprep.subr.mxu0 0.0
    %309 = vmatpush1.msra.mxu0 0.0
    %310 = vmatprep.subr.mxu0 0.0
    %311 = vmatpush1.msra.mxu0 0.0
    %312 = vmatprep.subr.mxu0 0.0
    %313 = vmatpush1.msra.mxu0 0.0
    %314 = vmatprep.subr.mxu0 0.0
    %315 = vmatpush1.msra.mxu0 0.0
    %316 = vmatprep.subr.mxu0 0.0
    %317 = vmatpush1.msra.mxu0 0.0
    %318 = vmatprep.subr.mxu0 0.0
    %319 = vmatpush1.msra.mxu0 0.0
    %320 = vmatprep.subr.mxu0 0.0
    %321 = vmatpush1.msra.mxu0 0.0
    %322 = vmatprep.subr.mxu0 0.0
    %323 = vmatpush1.msra.mxu0 0.0
    %324 = vmatprep.subr.mxu0 0.0
    %325 = vmatpush1.msra.mxu0 0.0
    %326 = vmatprep.subr.mxu0 0.0
    %327 = vmatpush1.msra.mxu0 0.0
    %328 = vmatprep.subr.mxu0 0.0
    %329 = vmatpush1.msra.mxu0 0.0
    %330 = vmatprep.subr.mxu0 0.0
    %331 = vmatpush1.msra.mxu0 0.0
    %332 = vmatprep.subr.mxu0 0.0
    %333 = vmatpush1.msra.mxu0 0.0
    %334 = vmatprep.subr.mxu0 0.0
    %335 = vmatpush1.msra.mxu0 0.0
    %336 = vmatprep.subr.mxu0 0.0
    %337 = vmatpush1.msra.mxu0 0.0
    %338 = vmatprep.subr.mxu0 0.0
    %339 = vmatpush1.msra.mxu0 0.0
    %340 = vmatprep.subr.mxu0 0.0
    %341 = vmatpush1.msra.mxu0 0.0
    %342 = vmatprep.subr.mxu0 0.0
    %343 = vmatpush1.msra.mxu0 0.0
    %344 = vmatprep.mubr.f32.mxu0 0.0
    %345 = vmatmul.mubr.f32.gmra.mrb[0].mxu0 %v278
    %v346 = vpop.f32.mrb[0].mxu0
    %v347 = vadd.f32 %v274, %v346
    %v348 = vpop.f32.mrb[0].mxu0
    %v349 = vadd.f32 %v274, %v348
    %350 = vdwg.mxu0
    %v351 = vmax.f32 %v347, 0.0
    %v352 = vmax.f32 %v349, 0.0
    %v356 = vrot.slane %v351, 4
    %v357 = vrot.slane %v352, 4
    %v360 = vsel %vm53, %v39, %v356
    %v361 = vsel %vm53, %v48, %v357
    %362 = vst [vmem:[%s6] sm:$0xff] %v360
    %363 = vst [vmem:[%s6 + $0x8] sm:$0xff] %v361
    %364 = vst [vmem:[%s6 + $0x10] sm:$0xf] %v356
    %365 = vst [vmem:[%s6 + $0x18] sm:$0xf] %v357
    %s366 = scalar_lea.vmem %s0, 8
    %v367 = vld [vmem:[%s366] sm:$0xff]
    %v368 = vld [vmem:[%s1] sm:$0xff]
    %v369 = vld [vmem:[%s2] sm:$0xff]
    %371 = vset.pattern.permute.xlu0 0
    %372 = vperm.xlu0 %371, %v369
    %v373 = vpop.permute.xlu0 %372
    %v376 = vcombine.high %v367, %v367
    %v378 = vsel %vm49, %v368, 0
    %v380 = vsel %vm53, %v367, 0
    %v382 = vsel %vm53, %v376, 0
    %384 = vmatprep.subr.mxu0 %v382
    %385 = vmatpush1.msra.mxu0 %v380
    %386 = vmatprep.subr.mxu0 0.0
    %387 = vmatpush1.msra.mxu0 0.0
    %388 = vmatprep.subr.mxu0 0.0
    %389 = vmatpush1.msra.mxu0 0.0
    %390 = vmatprep.subr.mxu0 0.0
    %391 = vmatpush1.msra.mxu0 0.0
    %392 = vmatprep.subr.mxu0 0.0
    %393 = vmatpush1.msra.mxu0 0.0
    %394 = vmatprep.subr.mxu0 0.0
    %395 = vmatpush1.msra.mxu0 0.0
    %396 = vmatprep.subr.mxu0 0.0
    %397 = vmatpush1.msra.mxu0 0.0
    %398 = vmatprep.subr.mxu0 0.0
    %399 = vmatpush1.msra.mxu0 0.0
    %400 = vmatprep.subr.mxu0 0.0
    %401 = vmatpush1.msra.mxu0 0.0
    %402 = vmatprep.subr.mxu0 0.0
    %403 = vmatpush1.msra.mxu0 0.0
    %404 = vmatprep.subr.mxu0 0.0
    %405 = vmatpush1.msra.mxu0 0.0
    %406 = vmatprep.subr.mxu0 0.0
    %407 = vmatpush1.msra.mxu0 0.0
    %408 = vmatprep.subr.mxu0 0.0
    %409 = vmatpush1.msra.mxu0 0.0
    %410 = vmatprep.subr.mxu0 0.0
    %411 = vmatpush1.msra.mxu0 0.0
    %412 = vmatprep.subr.mxu0 0.0
    %413 = vmatpush1.msra.mxu0 0.0
    %414 = vmatprep.subr.mxu0 0.0
    %415 = vmatpush1.msra.mxu0 0.0
    %416 = vmatprep.subr.mxu0 0.0
    %417 = vmatpush1.msra.mxu0 0.0
    %418 = vmatprep.subr.mxu0 0.0
    %419 = vmatpush1.msra.mxu0 0.0
    %420 = vmatprep.subr.mxu0 0.0
    %421 = vmatpush1.msra.mxu0 0.0
    %422 = vmatprep.subr.mxu0 0.0
    %423 = vmatpush1.msra.mxu0 0.0
    %424 = vmatprep.subr.mxu0 0.0
    %425 = vmatpush1.msra.mxu0 0.0
    %426 = vmatprep.subr.mxu0 0.0
    %427 = vmatpush1.msra.mxu0 0.0
    %428 = vmatprep.subr.mxu0 0.0
    %429 = vmatpush1.msra.mxu0 0.0
    %430 = vmatprep.subr.mxu0 0.0
    %431 = vmatpush1.msra.mxu0 0.0
    %432 = vmatprep.subr.mxu0 0.0
    %433 = vmatpush1.msra.mxu0 0.0
    %434 = vmatprep.subr.mxu0 0.0
    %435 = vmatpush1.msra.mxu0 0.0
    %436 = vmatprep.subr.mxu0 0.0
    %437 = vmatpush1.msra.mxu0 0.0
    %438 = vmatprep.subr.mxu0 0.0
    %439 = vmatpush1.msra.mxu0 0.0
    %440 = vmatprep.subr.mxu0 0.0
    %441 = vmatpush1.msra.mxu0 0.0
    %442 = vmatprep.subr.mxu0 0.0
    %443 = vmatpush1.msra.mxu0 0.0
    %444 = vmatprep.subr.mxu0 0.0
    %445 = vmatpush1.msra.mxu0 0.0
    %446 = vmatprep.subr.mxu0 0.0
    %447 = vmatpush1.msra.mxu0 0.0
    %448 = vmatprep.mubr.f32.mxu0 0.0
    %449 = vmatmul.mubr.f32.gmra.mrb[0].mxu0 %v378
    %v450 = vpop.f32.mrb[0].mxu0
    %v451 = vadd.f32 %v373, %v450
    %v452 = vpop.f32.mrb[0].mxu0
    %v453 = vadd.f32 %v373, %v452
    %454 = vdwg.mxu0
    %v455 = vmax.f32 %v451, 0.0
    %v456 = vmax.f32 %v453, 0.0
    %457 = vrot.lane.b32.xlu0 %v455, 17
    %v458 = vpop.permute.xlu0 %457
    %459 = vrot.lane.b32.xlu0 %v456, 17
    %v460 = vpop.permute.xlu0 %459
    %v461 = vsel %vm137, %v458, %v460
    %v462 = vsel %vm137, %v460, %v458
    %v463 = vmul.f32 %v462, %v143
    %v464 = vmul.f32 %v461, %v147
    %465 = vrot.lane.b32.xlu0 %v455, 16
    %v466 = vpop.permute.xlu0 %465
    %467 = vrot.lane.b32.xlu0 %v456, 16
    %v468 = vpop.permute.xlu0 %467
    %v469 = vsel %vm154, %v466, %v468
    %v470 = vsel %vm154, %v468, %v466
    %v471 = vmul.f32 %v470, %v160
    %v472 = vmul.f32 %v469, %v164
    %473 = vrot.lane.b32.xlu0 %v455, 15
    %v474 = vpop.permute.xlu0 %473
    %475 = vrot.lane.b32.xlu0 %v456, 15
    %v476 = vpop.permute.xlu0 %475
    %v477 = vsel %vm171, %v474, %v476
    %v478 = vsel %vm171, %v476, %v474
    %v479 = vmul.f32 %v478, %v177
    %v480 = vmul.f32 %v477, %v181
    %481 = vrot.lane.b32.xlu0 %v455, 1
    %v482 = vpop.permute.xlu0 %481
    %483 = vrot.lane.b32.xlu0 %v456, 1
    %v484 = vpop.permute.xlu0 %483
    %v485 = vsel %vm188, %v482, %v484
    %v486 = vsel %vm188, %v484, %v482
    %v487 = vmul.f32 %v486, %v194
    %v488 = vmul.f32 %v485, %v198
    %489 = vrot.lane.b32.xlu0 %v455, 127
    %v490 = vpop.permute.xlu0 %489
    %491 = vrot.lane.b32.xlu0 %v456, 127
    %v492 = vpop.permute.xlu0 %491
    %v493 = vsel %vm205, %v490, %v492
    %v494 = vsel %vm205, %v492, %v490
    %v495 = vmul.f32 %v493, %v211
    %v496 = vmul.f32 %v494, %v215
    %497 = vrot.lane.b32.xlu0 %v455, 113
    %v498 = vpop.permute.xlu0 %497
    %499 = vrot.lane.b32.xlu0 %v456, 113
    %v500 = vpop.permute.xlu0 %499
    %v501 = vsel %vm222, %v498, %v500
    %v502 = vsel %vm222, %v500, %v498
    %v503 = vmul.f32 %v501, %v228
    %v504 = vmul.f32 %v502, %v232
    %505 = vrot.lane.b32.xlu0 %v455, 112
    %v506 = vpop.permute.xlu0 %505
    %507 = vrot.lane.b32.xlu0 %v456, 112
    %v508 = vpop.permute.xlu0 %507
    %v509 = vsel %vm239, %v506, %v508
    %v510 = vsel %vm239, %v508, %v506
    %v511 = vmul.f32 %v509, %v245
    %v512 = vmul.f32 %v510, %v249
    %513 = vrot.lane.b32.xlu0 %v455, 111
    %v514 = vpop.permute.xlu0 %513
    %515 = vrot.lane.b32.xlu0 %v456, 111
    %v516 = vpop.permute.xlu0 %515
    %v517 = vsel %vm256, %v514, %v516
    %v518 = vsel %vm256, %v516, %v514
    %v519 = vmul.f32 %v517, %v262
    %v520 = vmul.f32 %v518, %v266
    %v521 = vld [vmem:[#allocation2] sm:$0xff]
    %v522 = vld [vmem:[%s4] sm:$0xff]
    %524 = vset.pattern.permute.xlu0 0
    %525 = vperm.xlu0 %524, %v522
    %v526 = vpop.permute.xlu0 %525
    %v529 = vsel %vm276, %v521, 0
    %531 = vmatprep.subr.mxu0 %v464
    %532 = vmatpush1.msra.mxu0 %v463
    %533 = vmatprep.subr.mxu0 %v472
    %534 = vmatpush1.msra.mxu0 %v471
    %535 = vmatprep.subr.mxu0 %v480
    %536 = vmatpush1.msra.mxu0 %v479
    %537 = vmatprep.subr.mxu0 %v488
    %538 = vmatpush1.msra.mxu0 %v487
    %539 = vmatprep.subr.mxu0 %v456
    %540 = vmatpush1.msra.mxu0 %v455
    %541 = vmatprep.subr.mxu0 %v496
    %542 = vmatpush1.msra.mxu0 %v495
    %543 = vmatprep.subr.mxu0 %v504
    %544 = vmatpush1.msra.mxu0 %v503
    %545 = vmatprep.subr.mxu0 %v512
    %546 = vmatpush1.msra.mxu0 %v511
    %547 = vmatprep.subr.mxu0 %v520
    %548 = vmatpush1.msra.mxu0 %v519
    %549 = vmatprep.subr.mxu0 0.0
    %550 = vmatpush1.msra.mxu0 0.0
    %551 = vmatprep.subr.mxu0 0.0
    %552 = vmatpush1.msra.mxu0 0.0
    %553 = vmatprep.subr.mxu0 0.0
    %554 = vmatpush1.msra.mxu0 0.0
    %555 = vmatprep.subr.mxu0 0.0
    %556 = vmatpush1.msra.mxu0 0.0
    %557 = vmatprep.subr.mxu0 0.0
    %558 = vmatpush1.msra.mxu0 0.0
    %559 = vmatprep.subr.mxu0 0.0
    %560 = vmatpush1.msra.mxu0 0.0
    %561 = vmatprep.subr.mxu0 0.0
    %562 = vmatpush1.msra.mxu0 0.0
    %563 = vmatprep.subr.mxu0 0.0
    %564 = vmatpush1.msra.mxu0 0.0
    %565 = vmatprep.subr.mxu0 0.0
    %566 = vmatpush1.msra.mxu0 0.0
    %567 = vmatprep.subr.mxu0 0.0
    %568 = vmatpush1.msra.mxu0 0.0
    %569 = vmatprep.subr.mxu0 0.0
    %570 = vmatpush1.msra.mxu0 0.0
    %571 = vmatprep.subr.mxu0 0.0
    %572 = vmatpush1.msra.mxu0 0.0
    %573 = vmatprep.subr.mxu0 0.0
    %574 = vmatpush1.msra.mxu0 0.0
    %575 = vmatprep.subr.mxu0 0.0
    %576 = vmatpush1.msra.mxu0 0.0
    %577 = vmatprep.subr.mxu0 0.0
    %578 = vmatpush1.msra.mxu0 0.0
    %579 = vmatprep.subr.mxu0 0.0
    %580 = vmatpush1.msra.mxu0 0.0
    %581 = vmatprep.subr.mxu0 0.0
    %582 = vmatpush1.msra.mxu0 0.0
    %583 = vmatprep.subr.mxu0 0.0
    %584 = vmatpush1.msra.mxu0 0.0
    %585 = vmatprep.subr.mxu0 0.0
    %586 = vmatpush1.msra.mxu0 0.0
    %587 = vmatprep.subr.mxu0 0.0
    %588 = vmatpush1.msra.mxu0 0.0
    %589 = vmatprep.subr.mxu0 0.0
    %590 = vmatpush1.msra.mxu0 0.0
    %591 = vmatprep.subr.mxu0 0.0
    %592 = vmatpush1.msra.mxu0 0.0
    %593 = vmatprep.subr.mxu0 0.0
    %594 = vmatpush1.msra.mxu0 0.0
    %595 = vmatprep.mubr.f32.mxu0 0.0
    %596 = vmatmul.mubr.f32.gmra.mrb[0].mxu0 %v529
    %v597 = vpop.f32.mrb[0].mxu0
    %v598 = vadd.f32 %v526, %v597
    %v599 = vpop.f32.mrb[0].mxu0
    %v600 = vadd.f32 %v526, %v599
    %601 = vdwg.mxu0
    %v602 = vmax.f32 %v598, 0.0
    %v603 = vmax.f32 %v600, 0.0
    %v607 = vrot.slane %v602, 4
    %v608 = vrot.slane %v603, 4
    %v611 = vsel %vm53, %v367, %v607
    %v612 = vsel %vm53, %v376, %v608
    %s613 = scalar_lea.vmem %s6, 32
    %614 = vst [vmem:[%s613] sm:$0xff] %v611
    %615 = vst [vmem:[%s613 + $0x8] sm:$0xff] %v612
    %616 = vst [vmem:[%s613 + $0x10] sm:$0xf] %v607
    %617 = vst [vmem:[%s613 + $0x18] sm:$0xf] %v608
    // Predicated region
    $region30: #{tpu_custom_call.1} parent=1 // pred_check
      _
    $region31: #{tpu_custom_call.1} parent=1 // pred_check_branch
      %619 = sbr.rel (0) target = $region33
    $region32: #{tpu_custom_call.1} parent=1 // pred_region
      _
    $region33: #{tpu_custom_call.1} parent=1 // pred_fallthru
      _
    // Predicated region
    $region34: #{tpu_custom_call.1} parent=1 // pred_check
      _
    $region35: #{tpu_custom_call.1} parent=1 // pred_check_branch
      %621 = sbr.rel (0) target = $region37
    $region36: #{tpu_custom_call.1} parent=1 // pred_region
      _
    $region37: #{tpu_custom_call.1} parent=1 // pred_fallthru
      _
    %622 = vsyncpa [#allocation3], 1

</llo_original>
